<compile_context>
chip_gen: v7x
topology: tpu7x:2x2x1
jax: 0.10.0
libtpu: 0.0.40
codegen_flags: <defaults>
</compile_context>

<pallas_src>
import functools
import math

import jax
import jax.numpy as jnp
from jax import lax
from jax.experimental import pallas as pl
from jax.experimental.pallas import tpu as pltpu

_LANE = 128
_SUBLANE_BYTES = 32  # one packed sublane group holds 32 bytes per lane


def _rmsnorm_kernel(x_ref, scale_ref, o_ref, *, eps, inv_dim):
    """Plain path: the full feature dim is the (lane) last axis of the block."""
    x = x_ref[...].astype(jnp.float32)                          # (tile_rows, dim)
    ms = jnp.sum(x * x, axis=-1, keepdims=True) * inv_dim       # (tile_rows, 1)
    rrms = lax.rsqrt(ms + eps)
    # Match torch: (x * rrms).to(x_dtype) * scale  (scale kept in float32)
    normed = (x * rrms).astype(x_ref.dtype)                     # no-op cast for f32 x
    o_ref[...] = (normed.astype(jnp.float32) * scale_ref[...]).astype(o_ref.dtype)


def _rmsnorm_folded_kernel(x_ref, scale_ref, seg_ref, o_ref, *, eps, inv_dim):
    """Small-dim path: `pack` logical rows are folded into one 128-lane row.

    seg_ref is a (pack*dim, pack*dim) block-diagonal ones matrix; (x*x) @ seg
    broadcasts each segment's sum back across its own lanes, keeping every
    load/store lane-dense and unmasked.
    """
    x = x_ref[...].astype(jnp.float32)                          # (tile_rows, pack*dim)
    segsum = jnp.dot(x * x, seg_ref[...],
                     preferred_element_type=jnp.float32)        # (tile_rows, pack*dim)
    rrms = lax.rsqrt(segsum * inv_dim + eps)
    normed = (x * rrms).astype(x_ref.dtype)
    o_ref[...] = (normed.astype(jnp.float32) * scale_ref[...]).astype(o_ref.dtype)


def _row_alignment(dtype) -> int:
    """Sublane packing: 8 rows for f32, 16 for bf16, 32 for int8/fp8."""
    return max(8, _SUBLANE_BYTES // jnp.dtype(dtype).itemsize)


def _pick_tile_rows(rows, per_row_bytes, align, vmem_budget_bytes):
    t = vmem_budget_bytes // max(per_row_bytes, 1)
    t = min(t, 1024)                               # gains flatten past ~1024 rows
    t = max(align, (t // align) * align)           # dtype-aligned sublane packing
    rows_up = ((rows + align - 1) // align) * align
    return min(t, rows_up)                         # don't exceed the data


def rmsnorm(x, scale, *, eps=1e-6, tile_rows=None,
            vmem_budget_bytes=32 * 1024 * 1024):
    """RMSNorm over the last axis of x, scaled by `scale` (shape (dim,))."""
    dim = x.shape[-1]
    lead_shape = x.shape[:-1]
    rows = int(math.prod(lead_shape)) if lead_shape else 1
    x2d = x.reshape(rows, dim)

    # Output dtype follows PyTorch promotion of (x_dtype * float32 scale).
    out_dtype = jnp.promote_types(x.dtype, scale.dtype)
    scale_f32 = scale.astype(jnp.float32)

    in_size = jnp.dtype(x.dtype).itemsize
    out_size = jnp.dtype(out_dtype).itemsize
    align = _row_alignment(x.dtype)

    # Fold rows into a 128-lane-dense layout when the feature dim is small.
    use_fold = (dim < _LANE) and (_LANE % dim == 0)
    padded_logical_rows = rows
    if use_fold:
        pack = _LANE // dim
        pad = (-rows) % pack
        if pad:  # tiny residual pad (< pack rows), only in the small-dim case
            x2d = jnp.pad(x2d, ((0, pad), (0, 0)))
            padded_logical_rows = rows + pad
        work_rows = padded_logical_rows // pack
        work_dim = pack * dim
        x2d = x2d.reshape(work_rows, work_dim)
    else:
        pack = 1
        work_rows = rows
        work_dim = dim

    # Per-row VMEM bytes: double-buffered in + out blocks plus an f32 working copy.
    per_row_bytes = work_dim * (2 * in_size + 2 * out_size + 4)
    if tile_rows is None:
        tile_rows = _pick_tile_rows(work_rows, per_row_bytes, align,
                                    vmem_budget_bytes)
    else:
        tile_rows = max(align, (int(tile_rows) // align) * align)
        rows_up = ((work_rows + align - 1) // align) * align
        tile_rows = min(tile_rows, rows_up)

    grid = (pl.cdiv(work_rows, tile_rows),)   # partial last block is masked by Pallas
    # Keep scoped VMEM within v7x's 64 MiB physical budget with headroom.
    vmem_limit = min(int(tile_rows * per_row_bytes) + (4 << 20), 48 << 20)

    compiler_params = pltpu.CompilerParams(
        dimension_semantics=("parallel",),     # shard row-grid across TensorCores
        vmem_limit_bytes=vmem_limit,
    )

    if use_fold:
        scale_blk = jnp.tile(scale_f32, pack).reshape(1, work_dim)
        seg_ids = jnp.arange(work_dim) // dim
        seg = (seg_ids[:, None] == seg_ids[None, :]).astype(jnp.float32)
        kernel = functools.partial(_rmsnorm_folded_kernel,
                                   eps=eps, inv_dim=1.0 / dim)
        out2d = pl.pallas_call(
            kernel,
            out_shape=jax.ShapeDtypeStruct((work_rows, work_dim), out_dtype),
            grid_spec=pltpu.PrefetchScalarGridSpec(
                num_scalar_prefetch=0,
                grid=grid,
                in_specs=[
                    pl.BlockSpec((tile_rows, work_dim), lambda i: (i, 0)),
                    pl.BlockSpec((1, work_dim), lambda i: (0, 0)),
                    pl.BlockSpec((work_dim, work_dim), lambda i: (0, 0)),
                ],
                out_specs=pl.BlockSpec((tile_rows, work_dim), lambda i: (i, 0)),
            ),
            compiler_params=compiler_params,
        )(x2d, scale_blk, seg)
        out = out2d.reshape(padded_logical_rows, dim)
        if padded_logical_rows != rows:
            out = out[:rows]
    else:
        scale_blk = scale_f32.reshape(1, work_dim)
        kernel = functools.partial(_rmsnorm_kernel, eps=eps, inv_dim=1.0 / dim)
        out = pl.pallas_call(
            kernel,
            out_shape=jax.ShapeDtypeStruct((work_rows, work_dim), out_dtype),
            grid_spec=pltpu.PrefetchScalarGridSpec(
                num_scalar_prefetch=0,
                grid=grid,
                in_specs=[
                    pl.BlockSpec((tile_rows, work_dim), lambda i: (i, 0)),
                    pl.BlockSpec((1, work_dim), lambda i: (0, 0)),
                ],
                out_specs=pl.BlockSpec((tile_rows, work_dim), lambda i: (i, 0)),
            ),
            compiler_params=compiler_params,
        )(x2d, scale_blk)

    return out.reshape(*lead_shape, dim)


def rmsnorm_ref(x, scale, eps=1e-6):
    xf = x.astype(jnp.float32)
    rrms = lax.rsqrt(jnp.mean(xf * xf, axis=-1, keepdims=True) + eps)
    return (xf * rrms).astype(x.dtype) * scale.astype(jnp.float32)


if __name__ == "__main__":
    key = jax.random.PRNGKey(0)

    # Main case (matches the module spec test): small hidden -> folded lane-dense path.
    batch, seq, hidden = 2, 8, 32
    x = jax.random.normal(key, (batch, seq, hidden), dtype=jnp.float32)
    scale = jnp.ones((hidden,), dtype=jnp.float32)   # nn.Parameter(torch.ones(dim))
    out = jax.block_until_ready(rmsnorm(x, scale))
    ref = rmsnorm_ref(x, scale)
    assert out.shape == ref.shape and out.dtype == ref.dtype
    assert jnp.allclose(out, ref, atol=1e-5, rtol=1e-5)

    # Plain path, f32, rows not a multiple of the tile (exercises edge masking).
    k1, k2 = jax.random.split(key)
    x2 = jax.random.normal(k1, (4, 256), dtype=jnp.float32)
    s2 = jax.random.normal(k2, (256,), dtype=jnp.float32) * 0.1 + 1.0
    out2 = jax.block_until_ready(rmsnorm(x2, s2))
    ref2 = rmsnorm_ref(x2, s2)
    assert out2.shape == ref2.shape and out2.dtype == ref2.dtype
    assert jnp.allclose(out2, ref2, atol=1e-5, rtol=1e-5)

    # bf16 input: output promotes to f32 (torch semantics), ragged row count.
    x3 = jax.random.normal(k2, (3, 5, 256), dtype=jnp.bfloat16)
    s3 = jnp.ones((256,), dtype=jnp.float32)
    out3 = jax.block_until_ready(rmsnorm(x3, s3))
    ref3 = rmsnorm_ref(x3, s3)
    assert out3.shape == ref3.shape and out3.dtype == ref3.dtype
    assert jnp.allclose(out3, ref3, atol=1e-2, rtol=1e-2)

    # Odd logical row count on the folded path (exercises the pad/slice branch).
    x4 = jax.random.normal(k1, (3, 7, 32), dtype=jnp.float32)
    out4 = jax.block_until_ready(rmsnorm(x4, scale))
    ref4 = rmsnorm_ref(x4, scale)
    assert out4.shape == ref4.shape and out4.dtype == ref4.dtype
    assert jnp.allclose(out4, ref4, atol=1e-5, rtol=1e-5)

    print("KERNEL_OK")
</pallas_src>

<mosaic_0001>
module attributes {stable_mosaic.version = 11 : i64} {
  func.func @_rmsnorm_folded_kernel(%arg0: i32, %arg1: memref<8x128xf32, #tpu.memory_space<vmem>>, %arg2: memref<1x128xf32, #tpu.memory_space<vmem>>, %arg3: memref<128x128xf32, #tpu.memory_space<vmem>>, %arg4: memref<8x128xf32, #tpu.memory_space<vmem>>) attributes {dimension_semantics = [#tpu.dimension_semantics<parallel>], iteration_bounds = array<i64: 1>, scalar_prefetch = 0 : i64, scratch_operands = 0 : i64, tpu.core_type = #tpu.core_type<tc>, window_params = [{transform_indices = @transform_0, window_bounds = array<i64: 8, 128>}, {pipeline_mode = #tpu.pipeline_mode<synchronous>, transform_indices = @transform_1, window_bounds = array<i64: 1, 128>}, {pipeline_mode = #tpu.pipeline_mode<synchronous>, transform_indices = @transform_2, window_bounds = array<i64: 128, 128>}, {transform_indices = @transform_3, window_bounds = array<i64: 8, 128>}]} {
    %c0 = arith.constant 0 : index
    %c0_0 = arith.constant 0 : index
    %0 = vector.load %arg1[%c0, %c0_0] : memref<8x128xf32, #tpu.memory_space<vmem>>, vector<8x128xf32>
    %1 = arith.mulf %0, %0 : vector<8x128xf32>
    %c0_1 = arith.constant 0 : index
    %c0_2 = arith.constant 0 : index
    %2 = vector.load %arg3[%c0_1, %c0_2] : memref<128x128xf32, #tpu.memory_space<vmem>>, vector<128x128xf32>
    %cst = arith.constant dense<0.000000e+00> : vector<8x128xf32>
    %3 = tpu.matmul %1, %2, %cst {dimension_numbers = #tpu.dot_dimension_numbers<[1], [0], [0], [1], [0, 0, 1, 1], [], []>} : vector<8x128xf32>, vector<128x128xf32>, vector<8x128xf32> -> vector<8x128xf32>
    %cst_3 = arith.constant 3.125000e-02 : f32
    %4 = vector.broadcast %cst_3 : f32 to vector<8x128xf32>
    %5 = arith.mulf %3, %4 : vector<8x128xf32>
    %cst_4 = arith.constant 9.99999997E-7 : f32
    %6 = vector.broadcast %cst_4 : f32 to vector<8x128xf32>
    %7 = arith.addf %5, %6 : vector<8x128xf32>
    %8 = math.rsqrt %7 : vector<8x128xf32>
    %9 = arith.mulf %0, %8 : vector<8x128xf32>
    %c0_5 = arith.constant 0 : index
    %c0_6 = arith.constant 0 : index
    %10 = vector.load %arg2[%c0_5, %c0_6] : memref<1x128xf32, #tpu.memory_space<vmem>>, vector<1x128xf32>
    %11 = vector.broadcast %10 : vector<1x128xf32> to vector<8x128xf32>
    %12 = arith.mulf %9, %11 : vector<8x128xf32>
    %c0_7 = arith.constant 0 : index
    %c0_8 = arith.constant 0 : index
    %13 = vector.load %arg4[%c0_7, %c0_8] : memref<8x128xf32, #tpu.memory_space<vmem>>, vector<8x128xf32>
    tpu.vector_store %arg4[%c0_7, %c0_8], %12 {strides = array<i32>} : memref<8x128xf32, #tpu.memory_space<vmem>>, vector<8x128xf32>,
    return
  }
  func.func @transform_0(%arg0: i32) -> (i32, i32) {
    %c0_i32 = arith.constant 0 : i32
    %c0_i32_0 = arith.constant 0 : i32
    return %arg0, %c0_i32 : i32, i32
  }
  func.func @transform_1(%arg0: i32) -> (i32, i32) {
    %c0_i32 = arith.constant 0 : i32
    %c0_i32_0 = arith.constant 0 : i32
    %c0_i32_1 = arith.constant 0 : i32
    return %c0_i32, %c0_i32_0 : i32, i32
  }
  func.func @transform_2(%arg0: i32) -> (i32, i32) {
    %c0_i32 = arith.constant 0 : i32
    %c0_i32_0 = arith.constant 0 : i32
    %c0_i32_1 = arith.constant 0 : i32
    return %c0_i32, %c0_i32_0 : i32, i32
  }
  func.func @transform_3(%arg0: i32) -> (i32, i32) {
    %c0_i32 = arith.constant 0 : i32
    %c0_i32_0 = arith.constant 0 : i32
    return %arg0, %c0_i32 : i32, i32
  }
}

</mosaic_0001>

<llo_original>
// kernel: tpu_custom_call.1
$region0: #{tpu_custom_call.1}
  #allocation0 [shape = 'u32[]', space=smem, size = 0x4, offset = 0x4, fixed_abs, tag = 'smem constant byte address 0x4 - core index']
  #allocation1 [shape = 'u32[144,128]{1,0:T(1,128)}', space=vmem, size = 0x12000, scoped, tag = 'internal scratch']
  %s0 = inlined_call_operand.hbm [shape: f32[4,128], index: 0, kind: input, shape index: {}]
  %s1 = inlined_call_operand.vmem [shape: f32[1,128], index: 1, kind: input, shape index: {}]
  %s2 = inlined_call_operand.hbm [shape: f32[128,128], index: 2, kind: input, shape index: {}]
  %s3 = inlined_call_operand.hbm [shape: f32[4,128], index: 3, kind: output, shape index: {}]
  %s4 = sld [smem:[#allocation0]]
  $region30: #{tpu_custom_call.1} parent=0
    _
  %s6 = ssub.s32 1, %s4
  %s7 = scalar_select 0, %s6, %s4
  $region1: #{tpu_custom_call.1} parent=0
    #allocation2 [shape = 'u8[4096]{0}', space=vmem, size = 0x1000, scoped, tag = 'input window, operand 0, single buffered']
    #allocation3 [shape = 's32[1]{0}', space=sflag, size = 0x4, scoped, tag = 'scoped memory for tpu_custom_call.1']
    #allocation4 [shape = 's32[1]{0}', space=sflag, size = 0x4, scoped, tag = 'scoped memory for tpu_custom_call.1']
    #allocation5 [shape = 'u8[65536]{0}', space=vmem, size = 0x10000, scoped, tag = 'input window, operand 2, single buffered']
    #allocation6 [shape = 's32[1]{0}', space=sflag, size = 0x4, scoped, tag = 'scoped memory for tpu_custom_call.1']
    #allocation7 [shape = 'u8[4096]{0}', space=vmem, size = 0x1000, scoped, tag = 'output window, operand 0, single buffered']
    %8 = vsyncpa [#allocation3], 0
    %9 = vsyncpa [#allocation6], 0
    %10 = vsyncpa [#allocation4], 0
    // Predicated region
    $region2: #{tpu_custom_call.1} parent=1 // pred_check
      _
    $region3: #{tpu_custom_call.1} parent=1 // pred_check_branch
      %12 = sbr.rel (0) target = $region5
    $region4: #{tpu_custom_call.1} parent=1 // pred_region
      %s14 = ssub.s32 128, 64
      %15 = vsyncadd [#allocation3], %s14
      %s16 = sshll.u32 [#allocation2], 4
      %s17 = int_to_ptr.vmem [resolvable:$true] %s16
      %22 = dma.hbm_to_vmem [thread:$0]  %s0, 64, %s17, [#allocation3], 64, 64, 4
    $region5: #{tpu_custom_call.1} parent=1 // pred_fallthru
      _
    // Predicated region
    $region6: #{tpu_custom_call.1} parent=1 // pred_check
      _
    $region7: #{tpu_custom_call.1} parent=1 // pred_check_branch
      %24 = sbr.rel (0) target = $region9
    $region8: #{tpu_custom_call.1} parent=1 // pred_region
      _
    $region9: #{tpu_custom_call.1} parent=1 // pred_fallthru
      _
    // Predicated region
    $region10: #{tpu_custom_call.1} parent=1 // pred_check
      _
    $region11: #{tpu_custom_call.1} parent=1 // pred_check_branch
      %26 = sbr.rel (0) target = $region13
    $region12: #{tpu_custom_call.1} parent=1 // pred_region
      %s28 = ssub.s32 2048, 2048
      %29 = vsyncadd [#allocation6], %s28
      %s30 = sshll.u32 [#allocation5], 4
      %s31 = int_to_ptr.vmem [resolvable:$true] %s30
      %36 = dma.hbm_to_vmem [thread:$0]  %s2, 2048, %s31, [#allocation6], 128, 128, 8
    $region13: #{tpu_custom_call.1} parent=1 // pred_fallthru
      _
    // Predicated region
    $region14: #{tpu_custom_call.1} parent=1 // pred_check
      _
    $region15: #{tpu_custom_call.1} parent=1 // pred_check_branch
      %38 = sbr.rel (0) target = $region17
    $region16: #{tpu_custom_call.1} parent=1 // pred_region
      %39 = dma.done [#allocation3], 128
    $region17: #{tpu_custom_call.1} parent=1 // pred_fallthru
      _
    // Predicated region
    $region18: #{tpu_custom_call.1} parent=1 // pred_check
      _
    $region19: #{tpu_custom_call.1} parent=1 // pred_check_branch
      %41 = sbr.rel (0) target = $region21
    $region20: #{tpu_custom_call.1} parent=1 // pred_region
      %42 = dma.done [#allocation6], 2048
    $region21: #{tpu_custom_call.1} parent=1 // pred_fallthru
      _
    %v43 = vld [vmem:[#allocation2] sm:$0xff]
    %v44 = vmul.f32 %v43, %v43
    %v45 = vld [vmem:[#allocation5] sm:$0xff]
    %v46 = vld [vmem:[#allocation5 + $0x8] sm:$0xff]
    %v47 = vld [vmem:[#allocation5 + $0x10] sm:$0xff]
    %v48 = vld [vmem:[#allocation5 + $0x18] sm:$0xff]
    %v49 = vld [vmem:[#allocation5 + $0x20] sm:$0xff]
    %v50 = vld [vmem:[#allocation5 + $0x28] sm:$0xff]
    %v51 = vld [vmem:[#allocation5 + $0x30] sm:$0xff]
    %v52 = vld [vmem:[#allocation5 + $0x38] sm:$0xff]
    %v53 = vld [vmem:[#allocation5 + $0x40] sm:$0xff]
    %v54 = vld [vmem:[#allocation5 + $0x48] sm:$0xff]
    %v55 = vld [vmem:[#allocation5 + $0x50] sm:$0xff]
    %v56 = vld [vmem:[#allocation5 + $0x58] sm:$0xff]
    %v57 = vld [vmem:[#allocation5 + $0x60] sm:$0xff]
    %v58 = vld [vmem:[#allocation5 + $0x68] sm:$0xff]
    %v59 = vld [vmem:[#allocation5 + $0x70] sm:$0xff]
    %v60 = vld [vmem:[#allocation5 + $0x78] sm:$0xff]
    %61 = vmatprep.subr.mxu0 0.0
    %62 = vmatpush1.msra.mxu0 %v45
    %63 = vmatprep.subr.mxu0 0.0
    %64 = vmatpush1.msra.mxu0 %v46
    %65 = vmatprep.subr.mxu0 0.0
    %66 = vmatpush1.msra.mxu0 %v47
    %67 = vmatprep.subr.mxu0 0.0
    %68 = vmatpush1.msra.mxu0 %v48
    %69 = vmatprep.subr.mxu0 0.0
    %70 = vmatpush1.msra.mxu0 %v49
    %71 = vmatprep.subr.mxu0 0.0
    %72 = vmatpush1.msra.mxu0 %v50
    %73 = vmatprep.subr.mxu0 0.0
    %74 = vmatpush1.msra.mxu0 %v51
    %75 = vmatprep.subr.mxu0 0.0
    %76 = vmatpush1.msra.mxu0 %v52
    %77 = vmatprep.subr.mxu0 0.0
    %78 = vmatpush1.msra.mxu0 %v53
    %79 = vmatprep.subr.mxu0 0.0
    %80 = vmatpush1.msra.mxu0 %v54
    %81 = vmatprep.subr.mxu0 0.0
    %82 = vmatpush1.msra.mxu0 %v55
    %83 = vmatprep.subr.mxu0 0.0
    %84 = vmatpush1.msra.mxu0 %v56
    %85 = vmatprep.subr.mxu0 0.0
    %86 = vmatpush1.msra.mxu0 %v57
    %87 = vmatprep.subr.mxu0 0.0
    %88 = vmatpush1.msra.mxu0 %v58
    %89 = vmatprep.subr.mxu0 0.0
    %90 = vmatpush1.msra.mxu0 %v59
    %91 = vmatprep.subr.mxu0 0.0
    %92 = vmatpush1.msra.mxu0 %v60
    %93 = vmatprep.subr.mxu0 0.0
    %94 = vmatpush1.msra.mxu0 0.0
    %95 = vmatprep.subr.mxu0 0.0
    %96 = vmatpush1.msra.mxu0 0.0
    %97 = vmatprep.subr.mxu0 0.0
    %98 = vmatpush1.msra.mxu0 0.0
    %99 = vmatprep.subr.mxu0 0.0
    %100 = vmatpush1.msra.mxu0 0.0
    %101 = vmatprep.subr.mxu0 0.0
    %102 = vmatpush1.msra.mxu0 0.0
    %103 = vmatprep.subr.mxu0 0.0
    %104 = vmatpush1.msra.mxu0 0.0
    %105 = vmatprep.subr.mxu0 0.0
    %106 = vmatpush1.msra.mxu0 0.0
    %107 = vmatprep.subr.mxu0 0.0
    %108 = vmatpush1.msra.mxu0 0.0
    %109 = vmatprep.subr.mxu0 0.0
    %110 = vmatpush1.msra.mxu0 0.0
    %111 = vmatprep.subr.mxu0 0.0
    %112 = vmatpush1.msra.mxu0 0.0
    %113 = vmatprep.subr.mxu0 0.0
    %114 = vmatpush1.msra.mxu0 0.0
    %115 = vmatprep.subr.mxu0 0.0
    %116 = vmatpush1.msra.mxu0 0.0
    %117 = vmatprep.subr.mxu0 0.0
    %118 = vmatpush1.msra.mxu0 0.0
    %119 = vmatprep.subr.mxu0 0.0
    %120 = vmatpush1.msra.mxu0 0.0
    %121 = vmatprep.subr.mxu0 0.0
    %122 = vmatpush1.msra.mxu0 0.0
    %123 = vmatprep.subr.mxu0 0.0
    %124 = vmatpush1.msra.mxu0 0.0
    %125 = vmatprep.mubr.f32.mxu0 0.0
    %126 = vmatmul.mubr.f32.gmra.mrb[0].mxu0 %v44
    %v127 = vpop.f32.mrb[0].mxu0
    %v128 = vadd.f32 0.0, %v127
    %v129 = vpop.f32.mrb[0].mxu0
    %130 = vdwg.mxu0
    %v131 = vmul.f32 %v128, 0.03125
    %v132 = vadd.f32 %v131, 1e-06
    %v133 = vrsqrt.pop %v132
    %v134 = vmul.f32 %v43, %v133
    %v135 = vld [vmem:[%s1] sm:$0x1]
    %v137 = vlaneseq
    %v138 = vshrl.u32 %v137, 7
    %v139 = vsub.s32 0, %v138
    %v140 = vrot.slane %v135, %v139
    %v142 = vmul.f32 %v134, %v140
    %143 = vst [vmem:[#allocation7] sm:$0xff] %v142
    // Predicated region
    $region22: #{tpu_custom_call.1} parent=1 // pred_check
      _
    $region23: #{tpu_custom_call.1} parent=1 // pred_check_branch
      %145 = sbr.rel (0) target = $region25
    $region24: #{tpu_custom_call.1} parent=1 // pred_region
      %s147 = ssub.s32 128, 64
      %148 = vsyncadd [#allocation4], %s147
      %s149 = sshll.u32 [#allocation7], 4
      %s150 = int_to_ptr.vmem [resolvable:$true] %s149
      %155 = dma.vmem_to_hbm [thread:$0]  %s150, 64, %s3, [#allocation4], 64, 64, 4
    $region25: #{tpu_custom_call.1} parent=1 // pred_fallthru
      _
    // Predicated region
    $region26: #{tpu_custom_call.1} parent=1 // pred_check
      _
    $region27: #{tpu_custom_call.1} parent=1 // pred_check_branch
      %157 = sbr.rel (0) target = $region29
    $region28: #{tpu_custom_call.1} parent=1 // pred_region
      %158 = dma.done [#allocation4], 128
    $region29: #{tpu_custom_call.1} parent=1 // pred_fallthru
      _
    %159 = vsyncpa [#allocation3], 1
    %160 = vsyncpa [#allocation6], 1
    %161 = vsyncpa [#allocation4], 1

</llo_original>
